<compile_context>
chip_gen: v7x
topology: tpu7x:2x2x1
jax: 0.10.0
libtpu: 0.0.40
codegen_flags: <defaults>
</compile_context>

<pallas_src>
import functools

import jax
import jax.numpy as jnp
from jax.experimental import pallas as pl
from jax.experimental.pallas import tpu as pltpu

_EPS = 1e-8                                 # PyTorch F.cosine_similarity default eps
_INPUT_VMEM_BUDGET = 24 * 1024 * 1024       # 2 inputs x 2 pipeline buffers, bytes
_VMEM_LIMIT_BYTES = 30 * 1024 * 1024        # raise scoped VMEM (v5e default is 16 MiB)
_MAX_ROW_TILE = 2048


def _neg_cos_kernel(p_ref, t_ref, o_ref, *, row_tile, total_rows):
    i = pl.program_id(0)

    p = p_ref[...].astype(jnp.float32)       # (TB, D) predictions tile
    t = t_ref[...].astype(jnp.float32)       # (TB, D) soft_targets tile

    dot = jnp.sum(t * p, axis=1, keepdims=True)   # (TB, 1)  x1 . x2
    w1 = jnp.sum(t * t, axis=1, keepdims=True)    # (TB, 1)  ||x1||^2
    w2 = jnp.sum(p * p, axis=1, keepdims=True)    # (TB, 1)  ||x2||^2

    # rsqrt goes to the EUP (free VLIW slot) instead of sqrt + VPU divide.
    cos = dot * jax.lax.rsqrt(jnp.maximum(w1 * w2, jnp.float32(_EPS * _EPS)))

    # Mask rows past the true batch size (partial final tile reads padding).
    row_ids = i * row_tile + jax.lax.broadcasted_iota(jnp.int32, cos.shape, 0)
    o_ref[...] = jnp.where(row_ids < total_rows, cos, jnp.float32(0.0))


def _pick_row_tile(batch, feat, itemsize):
    """Largest row tile whose double-buffered input traffic fits the budget."""
    per_row_bytes = 4 * feat * itemsize       # 2 inputs x 2 pipeline buffers
    tile = _INPUT_VMEM_BUDGET // max(per_row_bytes, 1)
    tile = int(min(tile, _MAX_ROW_TILE))
    tile = max((tile // 8) * 8, 8)            # sublane multiple
    if tile >= batch:
        return batch                          # single full-extent block is always legal
    return tile


def negative_cosine_loss(predictions, soft_targets, *, row_tile=None):
    """Pallas implementation of NegativeCosineLoss.forward (reduction dim = 1)."""
    assert predictions.shape == soft_targets.shape
    assert predictions.ndim == 2, "expected (batch, features) inputs"
    B, D = predictions.shape

    if row_tile is None:
        row_tile = _pick_row_tile(B, D, jnp.dtype(predictions.dtype).itemsize)
    # Enforce BlockSpec legality for user-supplied tiles.
    if row_tile >= B:
        row_tile = B
    elif row_tile % 8 != 0:
        row_tile = max((row_tile // 8) * 8, 8)
        row_tile = min(row_tile, B)

    num_tiles = pl.cdiv(B, row_tile)
    kernel = functools.partial(_neg_cos_kernel, row_tile=row_tile, total_rows=B)

    # Per-row cosine values (padded rows zeroed in-kernel); tiny vs input traffic.
    per_row = pl.pallas_call(
        kernel,
        out_shape=jax.ShapeDtypeStruct((num_tiles * row_tile, 1), jnp.float32),
        grid_spec=pltpu.PrefetchScalarGridSpec(
            num_scalar_prefetch=0,
            grid=(num_tiles,),
            in_specs=[
                pl.BlockSpec((row_tile, D), lambda i: (i, 0)),
                pl.BlockSpec((row_tile, D), lambda i: (i, 0)),
            ],
            out_specs=pl.BlockSpec((row_tile, 1), lambda i: (i, 0)),
        ),
        compiler_params=pltpu.CompilerParams(
            # Each tile writes its own output block -> fully parallel grid
            # (shards across both TensorCores on v7x).
            dimension_semantics=("parallel",),
            vmem_limit_bytes=_VMEM_LIMIT_BYTES,
        ),
    )(predictions, soft_targets)

    return -jnp.sum(per_row) / jnp.float32(B)


if __name__ == "__main__":
    key = jax.random.PRNGKey(0)
    kp, kt = jax.random.split(key)

    def ref_loss(p, t):
        dot = jnp.sum(t * p, axis=1)
        w1 = jnp.sum(t * t, axis=1)
        w2 = jnp.sum(p * p, axis=1)
        return -jnp.mean(dot / jnp.sqrt(jnp.maximum(w1 * w2, _EPS * _EPS)))

    # Small case (batch=8, hidden=32): single full block.
    B, D = 8, 32
    predictions = jax.random.normal(kp, (B, D), dtype=jnp.float32)
    soft_targets = jax.random.normal(kt, (B, D), dtype=jnp.float32)
    loss = jax.jit(negative_cosine_loss)(predictions, soft_targets)
    jax.block_until_ready(loss)
    assert jnp.allclose(loss, ref_loss(predictions, soft_targets),
                        atol=1e-5, rtol=1e-5), (loss, ref_loss(predictions, soft_targets))

    # Ragged batch (B=20, tile=8): exercises the masked partial-tile path.
    B2, D2 = 20, 32
    p2 = jax.random.normal(kp, (B2, D2), dtype=jnp.float32)
    t2 = jax.random.normal(kt, (B2, D2), dtype=jnp.float32)
    loss2 = jax.jit(functools.partial(negative_cosine_loss, row_tile=8))(p2, t2)
    jax.block_until_ready(loss2)
    assert jnp.allclose(loss2, ref_loss(p2, t2), atol=1e-5, rtol=1e-5), (loss2, ref_loss(p2, t2))

    print("KERNEL_OK")
</pallas_src>

<mosaic_0001>
module attributes {stable_mosaic.version = 11 : i64} {
  func.func @_neg_cos_kernel(%arg0: i32, %arg1: memref<8x32xf32, #tpu.memory_space<vmem>>, %arg2: memref<8x32xf32, #tpu.memory_space<vmem>>, %arg3: memref<8x1xf32, #tpu.memory_space<vmem>>) attributes {dimension_semantics = [#tpu.dimension_semantics<parallel>], iteration_bounds = array<i64: 1>, scalar_prefetch = 0 : i64, scratch_operands = 0 : i64, tpu.core_type = #tpu.core_type<tc>, window_params = [{transform_indices = @transform_0, window_bounds = array<i64: 8, 32>}, {transform_indices = @transform_1, window_bounds = array<i64: 8, 32>}, {transform_indices = @transform_2, window_bounds = array<i64: 8, 1>}]} {
    %c0 = arith.constant 0 : index
    %c0_0 = arith.constant 0 : index
    %0 = vector.load %arg1[%c0, %c0_0] : memref<8x32xf32, #tpu.memory_space<vmem>>, vector<8x32xf32>
    %c0_1 = arith.constant 0 : index
    %c0_2 = arith.constant 0 : index
    %1 = vector.load %arg2[%c0_1, %c0_2] : memref<8x32xf32, #tpu.memory_space<vmem>>, vector<8x32xf32>
    %2 = arith.mulf %1, %0 : vector<8x32xf32>
    %cst = arith.constant dense<0.000000e+00> : vector<8xf32>
    %3 = vector.multi_reduction <add>, %2, %cst [1] : vector<8x32xf32> to vector<8xf32>
    %4 = vector.shape_cast %3 : vector<8xf32> to vector<8x1xf32>
    %5 = arith.mulf %1, %1 : vector<8x32xf32>
    %cst_3 = arith.constant dense<0.000000e+00> : vector<8xf32>
    %6 = vector.multi_reduction <add>, %5, %cst_3 [1] : vector<8x32xf32> to vector<8xf32>
    %7 = vector.shape_cast %6 : vector<8xf32> to vector<8x1xf32>
    %8 = arith.mulf %0, %0 : vector<8x32xf32>
    %cst_4 = arith.constant dense<0.000000e+00> : vector<8xf32>
    %9 = vector.multi_reduction <add>, %8, %cst_4 [1] : vector<8x32xf32> to vector<8xf32>
    %10 = vector.shape_cast %9 : vector<8xf32> to vector<8x1xf32>
    %11 = arith.mulf %7, %10 : vector<8x1xf32>
    %cst_5 = arith.constant 1.000000e-16 : f32
    %12 = vector.broadcast %cst_5 : f32 to vector<8x1xf32>
    %13 = arith.maximumf %11, %12 : vector<8x1xf32>
    %14 = math.rsqrt %13 : vector<8x1xf32>
    %15 = arith.mulf %4, %14 : vector<8x1xf32>
    %c8_i32 = arith.constant 8 : i32
    %16 = arith.muli %arg0, %c8_i32 : i32
    %17 = tpu.iota {dimensions = array<i32: 0>} : vector<8x1xi32>
    %18 = vector.broadcast %16 : i32 to vector<8x1xi32>
    %19 = arith.addi %18, %17 : vector<8x1xi32>
    %c8_i32_6 = arith.constant 8 : i32
    %20 = vector.broadcast %c8_i32_6 : i32 to vector<8x1xi32>
    %21 = arith.cmpi slt, %19, %20 : vector<8x1xi32>
    %cst_7 = arith.constant 0.000000e+00 : f32
    %22 = vector.broadcast %cst_7 : f32 to vector<8x1xf32>
    %23 = arith.select %21, %15, %22 : vector<8x1xi1>, vector<8x1xf32>
    %c0_8 = arith.constant 0 : index
    %c0_9 = arith.constant 0 : index
    %24 = vector.load %arg3[%c0_8, %c0_9] : memref<8x1xf32, #tpu.memory_space<vmem>>, vector<8x1xf32>
    tpu.vector_store %arg3[%c0_8, %c0_9], %23 {strides = array<i32>} : memref<8x1xf32, #tpu.memory_space<vmem>>, vector<8x1xf32>,
    return
  }
  func.func @transform_0(%arg0: i32) -> (i32, i32) {
    %c0_i32 = arith.constant 0 : i32
    %c0_i32_0 = arith.constant 0 : i32
    return %arg0, %c0_i32 : i32, i32
  }
  func.func @transform_1(%arg0: i32) -> (i32, i32) {
    %c0_i32 = arith.constant 0 : i32
    %c0_i32_0 = arith.constant 0 : i32
    return %arg0, %c0_i32 : i32, i32
  }
  func.func @transform_2(%arg0: i32) -> (i32, i32) {
    %c0_i32 = arith.constant 0 : i32
    %c0_i32_0 = arith.constant 0 : i32
    return %arg0, %c0_i32 : i32, i32
  }
}

</mosaic_0001>

<llo_original>
// kernel: negative_cosine_loss.1
$region0: #{negative_cosine_loss.1}
  #allocation0 [shape = 'u32[]', space=smem, size = 0x4, offset = 0x4, fixed_abs, tag = 'smem constant byte address 0x4 - core index']
  #allocation1 [shape = 'u32[144,128]{1,0:T(1,128)}', space=vmem, size = 0x12000, scoped, tag = 'internal scratch']
  %s0 = inlined_call_operand.hbm [shape: f32[8,32], index: 0, kind: input, shape index: {}]
  %s1 = inlined_call_operand.hbm [shape: f32[8,32], index: 1, kind: input, shape index: {}]
  %s2 = inlined_call_operand.vmem [shape: f32[8,1], index: 2, kind: output, shape index: {}]
  %s3 = sld [smem:[#allocation0]]
  $region26: #{negative_cosine_loss.1} parent=0
    _
  %s5 = ssub.s32 1, %s3
  %s6 = scalar_select 0, %s5, %s3
  $region1: #{negative_cosine_loss.1} parent=0
    #allocation2 [shape = 'u8[4096]{0}', space=vmem, size = 0x1000, scoped, tag = 'input window, operand 0, single buffered']
    #allocation3 [shape = 's32[1]{0}', space=sflag, size = 0x4, scoped, tag = 'scoped memory for negative_cosine_loss.1']
    #allocation4 [shape = 'u8[4096]{0}', space=vmem, size = 0x1000, scoped, tag = 'input window, operand 1, single buffered']
    #allocation5 [shape = 's32[1]{0}', space=sflag, size = 0x4, scoped, tag = 'scoped memory for negative_cosine_loss.1']
    %7 = vsyncpa [#allocation3], 0
    %8 = vsyncpa [#allocation5], 0
    // Predicated region
    $region2: #{negative_cosine_loss.1} parent=1 // pred_check
      _
    $region3: #{negative_cosine_loss.1} parent=1 // pred_check_branch
      %10 = sbr.rel (0) target = $region5
    $region4: #{negative_cosine_loss.1} parent=1 // pred_region
      %s12 = ssub.s32 128, 128
      %13 = vsyncadd [#allocation3], %s12
      %s15 = sshll.u32 [#allocation2], 4
      %s16 = int_to_ptr.vmem [resolvable:$true] %s15
      %18 = dma.hbm_to_vmem [thread:$0]  %s0, 128, %s16, [#allocation3]
    $region5: #{negative_cosine_loss.1} parent=1 // pred_fallthru
      _
    // Predicated region
    $region6: #{negative_cosine_loss.1} parent=1 // pred_check
      _
    $region7: #{negative_cosine_loss.1} parent=1 // pred_check_branch
      %20 = sbr.rel (0) target = $region9
    $region8: #{negative_cosine_loss.1} parent=1 // pred_region
      %s22 = ssub.s32 128, 128
      %23 = vsyncadd [#allocation5], %s22
      %s25 = sshll.u32 [#allocation4], 4
      %s26 = int_to_ptr.vmem [resolvable:$true] %s25
      %28 = dma.hbm_to_vmem [thread:$0]  %s1, 128, %s26, [#allocation5]
    $region9: #{negative_cosine_loss.1} parent=1 // pred_fallthru
      _
    // Predicated region
    $region10: #{negative_cosine_loss.1} parent=1 // pred_check
      _
    $region11: #{negative_cosine_loss.1} parent=1 // pred_check_branch
      %30 = sbr.rel (0) target = $region13
    $region12: #{negative_cosine_loss.1} parent=1 // pred_region
      %31 = dma.done [#allocation3], 128
    $region13: #{negative_cosine_loss.1} parent=1 // pred_fallthru
      _
    // Predicated region
    $region14: #{negative_cosine_loss.1} parent=1 // pred_check
      _
    $region15: #{negative_cosine_loss.1} parent=1 // pred_check_branch
      %33 = sbr.rel (0) target = $region17
    $region16: #{negative_cosine_loss.1} parent=1 // pred_region
      %34 = dma.done [#allocation5], 128
    $region17: #{negative_cosine_loss.1} parent=1 // pred_fallthru
      _
    %v35 = vld [vmem:[#allocation2] sm:$0xff]
    %v36 = vld [vmem:[#allocation4] sm:$0xff]
    %v37 = vmul.f32 %v36, %v35
    %vm38 = vcmask 261120
    %v39 = vsel %vm38, %v37, 0.0
    %40 = vadd.xlane.f32.xlu0 %v39
    %v41 = vpop.xlane.xlu0 %40
    %v42 = vmul.f32 %v36, %v36
    %v43 = vsel %vm38, %v42, 0.0
    %44 = vadd.xlane.f32.xlu0 %v43
    %v45 = vpop.xlane.xlu0 %44
    %v46 = vmul.f32 %v35, %v35
    %v47 = vsel %vm38, %v46, 0.0
    %48 = vadd.xlane.f32.xlu0 %v47
    %v49 = vpop.xlane.xlu0 %48
    %v50 = vmul.f32 %v45, %v49
    %v51 = vmax.f32 %v50, 1e-16
    %v52 = vrsqrt.pop %v51
    %v53 = vmul.f32 %v41, %v52
    %s54 = smul.u32 0, 8
    %v55 = vlaneseq
    %v56 = vshrl.u32 %v55, 7
    %v57 = vstv %s54
    %v58 = vadd.s32 %v57, %v56
    %vm59 = vcmp.lt.s32.totalorder %v58, 8
    %v60 = vsel %vm59, %v53, 0.0
    %vm61 = vcmask 7168
    %62 = vst.msk [vmem:[%s2] sm:$0xff] %vm61, %v60
    // Predicated region
    $region18: #{negative_cosine_loss.1} parent=1 // pred_check
      _
    $region19: #{negative_cosine_loss.1} parent=1 // pred_check_branch
      %64 = sbr.rel (0) target = $region21
    $region20: #{negative_cosine_loss.1} parent=1 // pred_region
      _
    $region21: #{negative_cosine_loss.1} parent=1 // pred_fallthru
      _
    // Predicated region
    $region22: #{negative_cosine_loss.1} parent=1 // pred_check
      _
    $region23: #{negative_cosine_loss.1} parent=1 // pred_check_branch
      %66 = sbr.rel (0) target = $region25
    $region24: #{negative_cosine_loss.1} parent=1 // pred_region
      _
    $region25: #{negative_cosine_loss.1} parent=1 // pred_fallthru
      _
    %67 = vsyncpa [#allocation3], 1
    %68 = vsyncpa [#allocation5], 1

</llo_original>
